<compile_context>
chip_gen: v5e
topology: v5e:2x2
jax: 0.10.0
libtpu: 0.0.40
codegen_flags: <defaults>
</compile_context>

<pallas_src>
import functools

import jax
import jax.numpy as jnp
from jax.experimental import pallas as pl
from jax.experimental.pallas import tpu as pltpu


# ----------------------------------------------------------------------------
# generation-aware sizing helpers
# ----------------------------------------------------------------------------
def _round_up(x, m):
    return ((x + m - 1) // m) * m


def _vmem_limit_bytes():
    """Per-TensorCore VMEM budget: capacity minus >=16 MiB compiler headroom,
    capped at 100 MiB (128 MiB on v5e/v6e, only 64 MiB per TC on v7x)."""
    cap = None
    try:
        cap = getattr(pltpu.get_tpu_info(), "vmem_capacity_bytes", None)
    except Exception:
        cap = None
    if not cap:
        cap = 64 * 1024 * 1024            # assume the smallest generation (v7x)
    cap = int(cap)
    return max(32 * 1024 * 1024, min(cap - 16 * 1024 * 1024, 100 * 1024 * 1024))


def _choose_fused_tiles(hidden, vmem_limit_bytes):
    """Pick (tm, tv) for the fused LM-head + CE kernel from the VMEM budget.

    Weight HBM traffic scales with 1/tm (the (H, V) weight is re-streamed once
    per row tile), so tm is maximized first; tv then grows to keep stores
    lane-dense and amortize the ~0.35us/step grid overhead.  Everything is
    double-buffered by the pipeline, so each operand is budgeted twice.
    """
    budget = int(vmem_limit_bytes * 0.5)   # leave slack for compiler scratch
    fallback, have_fallback = (128, 128), False
    for tm in (1024, 512, 256, 128):
        for tv in (4096, 2048, 1024, 512, 256, 128):
            need = 2 * (2 * tm * hidden        # hidden tile (bf16, dbl-buffered)
                        + 2 * hidden * tv      # weight tile (bf16)
                        + 2 * tm * tv          # logits tile (bf16)
                        + 24 * tm)             # labels/mask/nll strips + scratch
            if need <= budget:
                if tv >= 512:
                    return tm, tv
                if not have_fallback:
                    fallback, have_fallback = (tm, tv), True
                break
    return fallback


# ----------------------------------------------------------------------------
# Kernel 1: segment recurrence (associative read + residual + memory update).
# Grid = (B, num_segments); state carried across segments in VMEM scratch.
# ----------------------------------------------------------------------------
def _segment_kernel(x_ref, wqkv_ref, hid_ref, state_ref, *, hidden):
    seg = pl.program_id(1)

    @pl.when(seg == 0)
    def _():
        # zero_mem(): fresh associative state at the start of every batch row
        state_ref[...] = jnp.zeros_like(state_ref)

    x = x_ref[0]                                           # (L, H) bf16

    # fused q/k/v projection: one (L, H) @ (H, 3H) MXU stream, f32 accumulation
    qkv = jnp.dot(x, wqkv_ref[...], preferred_element_type=jnp.float32)
    q = qkv[:, :hidden]
    k = qkv[:, hidden:2 * hidden]
    v = qkv[:, 2 * hidden:]

    phi_q = jax.nn.relu(q)                                 # f32 elementwise
    phi_k = jax.nn.relu(k)

    st = state_ref[...]                                    # (H, H) f32

    # associative read + residual.  Read uses the f32 state: its magnitude
    # grows with the number of segments, so a per-segment bf16 cast drifts.
    read = jnp.dot(phi_q, st, preferred_element_type=jnp.float32)   # (L, H) f32
    hid_ref[0] = (x.astype(jnp.float32) + read).astype(hid_ref.dtype)

    # associative write: state += phi_k^T @ v, expressed as a dot_general that
    # contracts the L axis directly (no explicit f32 XLU transpose); bf16 MXU
    # operands, f32 accumulation into the f32 state.
    update = jax.lax.dot_general(
        phi_k.astype(jnp.bfloat16), v.astype(jnp.bfloat16),
        dimension_numbers=(((0,), (0,)), ((), ())),
        preferred_element_type=jnp.float32)                # (H, H) f32
    state_ref[...] = st + update


def segment_recurrence(x_emb, wqkv, segment_size, vmem_limit):
    B, T, H = x_emb.shape
    assert T % segment_size == 0
    S = T // segment_size
    L = segment_size
    kernel = functools.partial(_segment_kernel, hidden=H)

    def call(w_spec):
        return pl.pallas_call(
            kernel,
            out_shape=jax.ShapeDtypeStruct((B, T, H), jnp.bfloat16),
            grid_spec=pltpu.PrefetchScalarGridSpec(
                num_scalar_prefetch=0,
                grid=(B, S),
                in_specs=[
                    pl.BlockSpec((1, L, H), lambda b, s: (b, s, 0)),
                    w_spec,                                 # VMEM-resident weight
                ],
                out_specs=pl.BlockSpec((1, L, H), lambda b, s: (b, s, 0)),
                scratch_shapes=[pltpu.VMEM((H, H), jnp.float32)],
            ),
            compiler_params=pltpu.CompilerParams(
                dimension_semantics=("parallel", "arbitrary"),
                vmem_limit_bytes=vmem_limit),
        )(x_emb, wqkv)

    # The (H, 3H) weight has a constant index_map: double-buffering it only
    # doubles its VMEM footprint, so request single buffering.  Fall back to
    # the default pipelined spec if this JAX build rejects pipeline_mode here.
    try:
        return call(pl.BlockSpec((H, 3 * H), lambda b, s: (0, 0),
                                 pipeline_mode=pl.Buffered(1)))
    except Exception:
        return call(pl.BlockSpec((H, 3 * H), lambda b, s: (0, 0)))


# ----------------------------------------------------------------------------
# Kernel 2: fused LM head + shifted/masked cross entropy (online logsumexp).
# Grid = (row tiles "parallel", vocab tiles "arbitrary").
# ----------------------------------------------------------------------------
def _lm_head_ce_kernel(h_ref, w_ref, lbl_ref, msk_ref, *rest,
                       tile_v, v_actual, mask_cols, write_logits):
    if write_logits:
        logits_ref, nll_ref, m_sc, l_sc, lab_sc = rest
    else:
        nll_ref, m_sc, l_sc, lab_sc = rest

    vt = pl.program_id(1)

    @pl.when(vt == 0)
    def _():
        m_sc[...] = jnp.full_like(m_sc, -jnp.inf)
        l_sc[...] = jnp.zeros_like(l_sc)
        lab_sc[...] = jnp.zeros_like(lab_sc)

    # LM-head tile straight off the MXU in f32; the CE statistics consume it
    # in-register, so the (B*T, V) logits never get re-read from HBM.
    logits = jnp.dot(h_ref[...], w_ref[...],
                     preferred_element_type=jnp.float32)    # (tm, tv) f32

    if write_logits:
        logits_ref[...] = logits.astype(logits_ref.dtype)

    col = jax.lax.broadcasted_iota(jnp.int32, logits.shape, 1) + vt * tile_v
    if mask_cols:
        # vocab padded up to a multiple of tile_v: padded columns must not
        # leak into the softmax normalizer.
        logits = jnp.where(col < v_actual, logits, -jnp.inf)

    # online logsumexp across the vocab ("arbitrary") grid axis
    m_prev = m_sc[...]
    m_new = jnp.maximum(m_prev, jnp.max(logits, axis=-1, keepdims=True))
    l_sc[...] = (l_sc[...] * jnp.exp(m_prev - m_new)
                 + jnp.sum(jnp.exp(logits - m_new), axis=-1, keepdims=True))
    m_sc[...] = m_new

    # pick out the label logit if it lives in this vocab tile
    hit = col == lbl_ref[...]
    lab_sc[...] += jnp.sum(jnp.where(hit, logits, 0.0), axis=-1, keepdims=True)

    @pl.when(vt == pl.num_programs(1) - 1)
    def _():
        lse = m_sc[...] + jnp.log(l_sc[...])
        nll_ref[...] = (lse - lab_sc[...]) * msk_ref[...]


def lm_head_and_ce(hidden2d, wlm_padded, labels2d, mask2d, *, v_actual,
                   tile_m, tile_v, vmem_limit, write_logits=True):
    R, H = hidden2d.shape
    _, Vp = wlm_padded.shape
    assert R % tile_m == 0 and Vp % tile_v == 0

    kernel = functools.partial(
        _lm_head_ce_kernel, tile_v=tile_v, v_actual=v_actual,
        mask_cols=(Vp != v_actual), write_logits=write_logits)

    out_shape = []
    out_specs = []
    if write_logits:
        out_shape.append(jax.ShapeDtypeStruct((R, Vp), jnp.bfloat16))
        out_specs.append(pl.BlockSpec((tile_m, tile_v), lambda r, v: (r, v)))
    out_shape.append(jax.ShapeDtypeStruct((R, 1), jnp.float32))
    out_specs.append(pl.BlockSpec((tile_m, 1), lambda r, v: (r, 0)))

    res = pl.pallas_call(
        kernel,
        out_shape=tuple(out_shape),
        grid_spec=pltpu.PrefetchScalarGridSpec(
            num_scalar_prefetch=0,
            # Row tiles outer and "parallel" (each TensorCore carries its own
            # online-softmax scratch); vocab tiles are the trailing "arbitrary"
            # reduction axis of the online logsumexp.
            grid=(R // tile_m, Vp // tile_v),
            in_specs=[
                pl.BlockSpec((tile_m, H), lambda r, v: (r, 0)),
                pl.BlockSpec((H, tile_v), lambda r, v: (0, v)),
                pl.BlockSpec((tile_m, 1), lambda r, v: (r, 0)),
                pl.BlockSpec((tile_m, 1), lambda r, v: (r, 0)),
            ],
            out_specs=tuple(out_specs),
            scratch_shapes=[pltpu.VMEM((tile_m, 1), jnp.float32)] * 3,
        ),
        compiler_params=pltpu.CompilerParams(
            dimension_semantics=("parallel", "arbitrary"),
            vmem_limit_bytes=vmem_limit),
    )(hidden2d, wlm_padded, labels2d, mask2d)

    if write_logits:
        logits2d, nll = res
    else:
        logits2d = None
        nll = res[0] if isinstance(res, (list, tuple)) else res
    return logits2d, nll


# ----------------------------------------------------------------------------
# JAX-side wrapper mirroring AssociativeRecurrentWrapper.forward
# ----------------------------------------------------------------------------
class AssociativeRecurrentWrapper:
    def __init__(self, params, *, segment_size, num_mem_tokens=0):
        self.params = params
        self.segment_size = segment_size
        self.num_mem_tokens = num_mem_tokens   # attribute only (sliding_window off)

        H = params["wq"].shape[0]
        V = params["wlm"].shape[1]
        self._hidden = H
        self._vocab = V
        self._vmem_limit = _vmem_limit_bytes()

        # bf16 operand copies for the MXU hot paths; accumulation stays f32.
        self._emb = params["emb"].astype(jnp.bfloat16)
        # Wq/Wk/Wv fused into one (H, 3H) operand -> single MXU stream per segment.
        self._wqkv = jnp.concatenate(
            [params["wq"], params["wk"], params["wv"]], axis=1).astype(jnp.bfloat16)

        # Vocab padded once, at init, to a lane/MXU aligned multiple of the vocab
        # tile (instead of a full-extent fallback block at odd vocab sizes).
        tm_pref, tv_pref = _choose_fused_tiles(H, self._vmem_limit)
        self._tile_m_pref = tm_pref
        self._tile_v = min(tv_pref, _round_up(V, 128))
        self._v_padded = _round_up(V, self._tile_v)
        wlm = params["wlm"].astype(jnp.bfloat16)
        if self._v_padded != V:
            wlm = jnp.pad(wlm, ((0, 0), (0, self._v_padded - V)))
        self._wlm = wlm

    def forward(self, input_ids, labels=None, labels_mask=None, return_logits=True):
        B, T = input_ids.shape
        H, V = self._hidden, self._vocab
        ss = self.segment_size

        # embedding lookup (glue, plain JAX)
        x_emb = jnp.take(self._emb, input_ids, axis=0)            # (B, T, H) bf16

        # left-aligned segmentation; pad the ragged tail (padded rows are sliced
        # off before the LM head and cannot corrupt earlier segments).
        pad_t = (-T) % ss
        if pad_t:
            x_emb = jnp.pad(x_emb, ((0, 0), (0, pad_t), (0, 0)))
        hidden = segment_recurrence(x_emb, self._wqkv, ss, self._vmem_limit)
        if pad_t:
            hidden = hidden[:, :T]                                # (B, T, H) bf16

        # label / mask shift on the tiny (B, T) tensors: logits position j scores
        # label j+1 with weight labels_mask[j]; position T-1 is masked out.
        if labels is not None:
            shifted_labels = jnp.roll(labels.astype(jnp.int32), -1, axis=1)
            mask = (labels_mask.astype(jnp.float32) if labels_mask is not None
                    else jnp.ones((B, T), jnp.float32))
            mask = jnp.where(jnp.arange(T)[None, :] < T - 1, mask, 0.0)
        else:
            shifted_labels = jnp.zeros((B, T), jnp.int32)
            mask = jnp.zeros((B, T), jnp.float32)

        # fold (B, T) into rows; pad rows to an MXU-aligned multiple of tile_m.
        R = B * T
        tile_m = min(self._tile_m_pref, _round_up(R, 256))
        r_padded = _round_up(R, tile_m)
        hidden2d = hidden.reshape(R, H)
        labels2d = shifted_labels.reshape(R, 1)
        mask2d = mask.reshape(R, 1)
        if r_padded != R:
            pad_r = r_padded - R
            hidden2d = jnp.pad(hidden2d, ((0, pad_r), (0, 0)))
            labels2d = jnp.pad(labels2d, ((0, pad_r), (0, 0)))
            mask2d = jnp.pad(mask2d, ((0, pad_r), (0, 0)))

        # fused LM head + masked CE: logits never round-trip HBM for the loss,
        # and are not materialized at all when return_logits=False (training).
        logits2d, nll = lm_head_and_ce(
            hidden2d, self._wlm, labels2d, mask2d,
            v_actual=V, tile_m=tile_m, tile_v=self._tile_v,
            vmem_limit=self._vmem_limit, write_logits=return_logits)

        loss = jnp.float32(0.0)
        if labels is not None:
            num = jnp.sum(nll)                       # padded rows contribute 0
            den = jnp.sum(mask2d)
            loss = jnp.where(den > 0.0, num / jnp.where(den > 0.0, den, 1.0), 0.0)

        full_logits = None
        if return_logits:
            full_logits = logits2d[:R, :V].reshape(B, T, V)

        return {"loss": loss, "ce_loss": loss, "logits": full_logits}


# ----------------------------------------------------------------------------
# Deterministic parameter init, pure-JAX reference, smoke test
# ----------------------------------------------------------------------------
def make_params(key, vocab, hidden):
    k_emb, k_q, k_k, k_v, k_lm = jax.random.split(key, 5)
    scale = 1.0 / jnp.sqrt(jnp.float32(hidden))
    return {
        "emb": jax.random.normal(k_emb, (vocab, hidden), jnp.float32) * scale,
        "wq": jax.random.normal(k_q, (hidden, hidden), jnp.float32) * scale,
        "wk": jax.random.normal(k_k, (hidden, hidden), jnp.float32) * scale,
        "wv": jax.random.normal(k_v, (hidden, hidden), jnp.float32) * scale,
        "wlm": jax.random.normal(k_lm, (hidden, vocab), jnp.float32) * scale,
    }


def _reference_forward(params, input_ids, labels, labels_mask, segment_size):
    """Pure-JAX f32 reference with the same semantics (loose sanity check)."""
    emb, wq, wk, wv, wlm = (params[k] for k in ("emb", "wq", "wk", "wv", "wlm"))
    x = emb[input_ids]                                           # (B, T, H)
    B, T, H = x.shape
    state = jnp.zeros((B, H, H), jnp.float32)
    hs = []
    for s0 in range(0, T, segment_size):
        xs = x[:, s0:s0 + segment_size]
        pq = jax.nn.relu(xs @ wq)
        pk = jax.nn.relu(xs @ wk)
        v = xs @ wv
        hs.append(xs + jnp.einsum("blh,bhk->blk", pq, state))
        state = state + jnp.einsum("blh,blk->bhk", pk, v)
    logits = jnp.concatenate(hs, axis=1) @ wlm                   # (B, T, V)
    sl, st, sm = logits[:, :-1], labels[:, 1:], labels_mask[:, :-1].astype(jnp.float32)
    lse = jax.nn.logsumexp(sl, axis=-1)
    lbl = jnp.take_along_axis(sl, st[..., None].astype(jnp.int32), axis=-1)[..., 0]
    loss = jnp.sum((lse - lbl) * sm) / jnp.sum(sm)
    return logits, loss


if __name__ == "__main__":
    B, T, SEG, H, V = 2, 24, 8, 32, 64

    key = jax.random.PRNGKey(0)
    k_par, k_ids, k_lab, k_msk = jax.random.split(key, 4)

    params = make_params(k_par, V, H)
    wrapper = AssociativeRecurrentWrapper(params, segment_size=SEG,
                                          num_mem_tokens=4)

    input_ids = jax.random.randint(k_ids, (B, T), 0, V, dtype=jnp.int32)
    labels = jax.random.randint(k_lab, (B, T), 0, V, dtype=jnp.int32)
    labels_mask = (jax.random.uniform(k_msk, (B, T)) < 0.8).astype(jnp.float32)
    labels_mask = labels_mask.at[0, 0].set(1.0)   # at least one scored token

    out = wrapper.forward(input_ids, labels=labels, labels_mask=labels_mask)
    jax.block_until_ready(out["logits"])
    jax.block_until_ready(out["loss"])

    assert out["logits"].shape == (B, T, V)
    assert out["loss"].shape == ()
    assert bool(jnp.isfinite(out["loss"]))

    # loss-only path (no logits materialization) must agree with the full path
    out2 = wrapper.forward(input_ids, labels=labels, labels_mask=labels_mask,
                           return_logits=False)
    jax.block_until_ready(out2["loss"])
    assert out2["logits"] is None
    assert float(jnp.abs(out2["loss"] - out["loss"])) < 1e-5

    # loose numerical check vs f32 reference (kernel runs bf16 MXU operands)
    ref_logits, ref_loss = _reference_forward(params, input_ids, labels,
                                              labels_mask, SEG)
    logits_err = float(jnp.max(jnp.abs(out["logits"].astype(jnp.float32) - ref_logits)))
    loss_err = float(jnp.abs(out["loss"] - ref_loss))
    assert logits_err < 5e-2, f"logits mismatch: {logits_err}"
    assert loss_err < 5e-2, f"loss mismatch: {loss_err}"

    print("KERNEL_OK")
</pallas_src>

<mosaic_0001>
module attributes {stable_mosaic.version = 11 : i64} {
  func.func @_segment_kernel(%arg0: i32, %arg1: i32, %arg2: memref<1x8x32xbf16, #tpu.memory_space<vmem>>, %arg3: memref<32x96xbf16, #tpu.memory_space<vmem>>, %arg4: memref<1x8x32xbf16, #tpu.memory_space<vmem>>, %arg5: memref<32x32xf32, #tpu.memory_space<vmem>>) attributes {dimension_semantics = [#tpu.dimension_semantics<parallel>, #tpu.dimension_semantics<arbitrary>], iteration_bounds = array<i64: 2, 3>, scalar_prefetch = 0 : i64, scratch_operands = 1 : i64, tpu.core_type = #tpu.core_type<tc>, window_params = [{transform_indices = @transform_0, window_bounds = array<i64: 1, 8, 32>}, {pipeline_mode = #tpu.pipeline_mode<synchronous>, transform_indices = @transform_1, window_bounds = array<i64: 32, 96>}, {transform_indices = @transform_2, window_bounds = array<i64: 1, 8, 32>}]} {
    %c0_i32 = arith.constant 0 : i32
    %0 = arith.cmpi eq, %arg1, %c0_i32 : i32
    %1 = arith.extui %0 : i1 to i32
    %c0_i32_0 = arith.constant 0 : i32
    %2 = arith.cmpi ne, %1, %c0_i32_0 : i32
    scf.if %2 {
      %cst_16 = arith.constant 0.000000e+00 : f32
      %27 = vector.broadcast %cst_16 : f32 to vector<32x32xf32>
      %c0_17 = arith.constant 0 : index
      %c0_18 = arith.constant 0 : index
      %28 = vector.load %arg5[%c0_17, %c0_18] : memref<32x32xf32, #tpu.memory_space<vmem>>, vector<32x32xf32>
      tpu.vector_store %arg5[%c0_17, %c0_18], %27 {strides = array<i32>} : memref<32x32xf32, #tpu.memory_space<vmem>>, vector<32x32xf32>,
    } else {
    }
    %c0 = arith.constant 0 : index
    %c0_1 = arith.constant 0 : index
    %c0_2 = arith.constant 0 : index
    %3 = vector.load %arg2[%c0, %c0_1, %c0_2] : memref<1x8x32xbf16, #tpu.memory_space<vmem>>, vector<1x8x32xbf16>
    %4 = vector.shape_cast %3 : vector<1x8x32xbf16> to vector<8x32xbf16>
    %c0_3 = arith.constant 0 : index
    %c0_4 = arith.constant 0 : index
    %5 = vector.load %arg3[%c0_3, %c0_4] : memref<32x96xbf16, #tpu.memory_space<vmem>>, vector<32x96xbf16>
    %cst = arith.constant dense<0.000000e+00> : vector<8x96xf32>
    %6 = tpu.matmul %4, %5, %cst {dimension_numbers = #tpu.dot_dimension_numbers<[1], [0], [0], [1], [0, 0, 1, 1], [], []>} : vector<8x32xbf16>, vector<32x96xbf16>, vector<8x96xf32> -> vector<8x96xf32>
    %7 = vector.extract_strided_slice %6 {offsets = [0, 0], sizes = [8, 32], strides = [1, 1]} : vector<8x96xf32> to vector<8x32xf32>
    %8 = vector.extract_strided_slice %6 {offsets = [0, 32], sizes = [8, 32], strides = [1, 1]} : vector<8x96xf32> to vector<8x32xf32>
    %9 = vector.extract_strided_slice %6 {offsets = [0, 64], sizes = [8, 32], strides = [1, 1]} : vector<8x96xf32> to vector<8x32xf32>
    %cst_5 = arith.constant 0.000000e+00 : f32
    %10 = vector.broadcast %cst_5 : f32 to vector<8x32xf32>
    %11 = arith.maximumf %7, %10 : vector<8x32xf32>
    %cst_6 = arith.constant 0.000000e+00 : f32
    %12 = vector.broadcast %cst_6 : f32 to vector<8x32xf32>
    %13 = arith.maximumf %8, %12 : vector<8x32xf32>
    %c0_7 = arith.constant 0 : index
    %c0_8 = arith.constant 0 : index
    %14 = vector.load %arg5[%c0_7, %c0_8] : memref<32x32xf32, #tpu.memory_space<vmem>>, vector<32x32xf32>
    %cst_9 = arith.constant dense<0.000000e+00> : vector<8x32xf32>
    %15 = tpu.matmul %11, %14, %cst_9 {dimension_numbers = #tpu.dot_dimension_numbers<[1], [0], [0], [1], [0, 0, 1, 1], [], []>} : vector<8x32xf32>, vector<32x32xf32>, vector<8x32xf32> -> vector<8x32xf32>
    %16 = arith.extf %4 : vector<8x32xbf16> to vector<8x32xf32>
    %17 = arith.addf %16, %15 : vector<8x32xf32>
    %18 = arith.truncf %17 : vector<8x32xf32> to vector<8x32xbf16>
    %c0_10 = arith.constant 0 : index
    %c0_11 = arith.constant 0 : index
    %c0_12 = arith.constant 0 : index
    %19 = vector.load %arg4[%c0_10, %c0_11, %c0_12] : memref<1x8x32xbf16, #tpu.memory_space<vmem>>, vector<1x8x32xbf16>
    %20 = vector.shape_cast %19 : vector<1x8x32xbf16> to vector<8x32xbf16>
    %21 = vector.shape_cast %18 : vector<8x32xbf16> to vector<1x8x32xbf16>
    tpu.vector_store %arg4[%c0_10, %c0_11, %c0_12], %21 {strides = array<i32>} : memref<1x8x32xbf16, #tpu.memory_space<vmem>>, vector<1x8x32xbf16>,
    %22 = arith.truncf %13 : vector<8x32xf32> to vector<8x32xbf16>
    %23 = arith.truncf %9 : vector<8x32xf32> to vector<8x32xbf16>
    %cst_13 = arith.constant dense<0.000000e+00> : vector<32x32xf32>
    %24 = tpu.matmul %22, %23, %cst_13 {dimension_numbers = #tpu.dot_dimension_numbers<[0], [0], [1], [1], [0, 1, 1, 1], [], []>} : vector<8x32xbf16>, vector<8x32xbf16>, vector<32x32xf32> -> vector<32x32xf32>
    %25 = arith.addf %14, %24 : vector<32x32xf32>
    %c0_14 = arith.constant 0 : index
    %c0_15 = arith.constant 0 : index
    %26 = vector.load %arg5[%c0_14, %c0_15] : memref<32x32xf32, #tpu.memory_space<vmem>>, vector<32x32xf32>
    tpu.vector_store %arg5[%c0_14, %c0_15], %25 {strides = array<i32>} : memref<32x32xf32, #tpu.memory_space<vmem>>, vector<32x32xf32>,
    return
  }
  func.func @transform_0(%arg0: i32, %arg1: i32) -> (i32, i32, i32) {
    %c0_i32 = arith.constant 0 : i32
    %c0_i32_0 = arith.constant 0 : i32
    return %arg0, %arg1, %c0_i32 : i32, i32, i32
  }
  func.func @transform_1(%arg0: i32, %arg1: i32) -> (i32, i32) {
    %c0_i32 = arith.constant 0 : i32
    %c0_i32_0 = arith.constant 0 : i32
    %c0_i32_1 = arith.constant 0 : i32
    return %c0_i32, %c0_i32_0 : i32, i32
  }
  func.func @transform_2(%arg0: i32, %arg1: i32) -> (i32, i32, i32) {
    %c0_i32 = arith.constant 0 : i32
    %c0_i32_0 = arith.constant 0 : i32
    return %arg0, %arg1, %c0_i32 : i32, i32, i32
  }
}

module attributes {stable_mosaic.version = 11 : i64} {
  func.func @_segment_kernel(%arg0: i32, %arg1: i32, %arg2: memref<1x8x32xbf16, #tpu.memory_space<vmem>>, %arg3: memref<32x96xbf16, #tpu.memory_space<vmem>>, %arg4: memref<1x8x32xbf16, #tpu.memory_space<vmem>>, %arg5: memref<32x32xf32, #tpu.memory_space<vmem>>) attributes {dimension_semantics = [#tpu.dimension_semantics<parallel>, #tpu.dimension_semantics<arbitrary>], iteration_bounds = array<i64: 2, 3>, scalar_prefetch = 0 : i64, scratch_operands = 1 : i64, tpu.core_type = #tpu.core_type<tc>, window_params = [{transform_indices = @transform_0, window_bounds = array<i64: 1, 8, 32>}, {pipeline_mode = #tpu.pipeline_mode<synchronous>, transform_indices = @transform_1, window_bounds = array<i64: 32, 96>}, {transform_indices = @transform_2, window_bounds = array<i64: 1, 8, 32>}]} {
    %c0_i32 = arith.constant 0 : i32
    %0 = arith.cmpi eq, %arg1, %c0_i32 : i32
    %1 = arith.extui %0 : i1 to i32
    %c0_i32_0 = arith.constant 0 : i32
    %2 = arith.cmpi ne, %1, %c0_i32_0 : i32
    scf.if %2 {
      %cst_16 = arith.constant 0.000000e+00 : f32
      %27 = vector.broadcast %cst_16 : f32 to vector<32x32xf32>
      %c0_17 = arith.constant 0 : index
      %c0_18 = arith.constant 0 : index
      %28 = vector.load %arg5[%c0_17, %c0_18] : memref<32x32xf32, #tpu.memory_space<vmem>>, vector<32x32xf32>
      tpu.vector_store %arg5[%c0_17, %c0_18], %27 {strides = array<i32>} : memref<32x32xf32, #tpu.memory_space<vmem>>, vector<32x32xf32>,
    } else {
    }
    %c0 = arith.constant 0 : index
    %c0_1 = arith.constant 0 : index
    %c0_2 = arith.constant 0 : index
    %3 = vector.load %arg2[%c0, %c0_1, %c0_2] : memref<1x8x32xbf16, #tpu.memory_space<vmem>>, vector<1x8x32xbf16>
    %4 = vector.shape_cast %3 : vector<1x8x32xbf16> to vector<8x32xbf16>
    %c0_3 = arith.constant 0 : index
    %c0_4 = arith.constant 0 : index
    %5 = vector.load %arg3[%c0_3, %c0_4] : memref<32x96xbf16, #tpu.memory_space<vmem>>, vector<32x96xbf16>
    %cst = arith.constant dense<0.000000e+00> : vector<8x96xf32>
    %6 = tpu.matmul %4, %5, %cst {dimension_numbers = #tpu.dot_dimension_numbers<[1], [0], [0], [1], [0, 0, 1, 1], [], []>} : vector<8x32xbf16>, vector<32x96xbf16>, vector<8x96xf32> -> vector<8x96xf32>
    %7 = vector.extract_strided_slice %6 {offsets = [0, 0], sizes = [8, 32], strides = [1, 1]} : vector<8x96xf32> to vector<8x32xf32>
    %8 = vector.extract_strided_slice %6 {offsets = [0, 32], sizes = [8, 32], strides = [1, 1]} : vector<8x96xf32> to vector<8x32xf32>
    %9 = vector.extract_strided_slice %6 {offsets = [0, 64], sizes = [8, 32], strides = [1, 1]} : vector<8x96xf32> to vector<8x32xf32>
    %cst_5 = arith.constant 0.000000e+00 : f32
    %10 = vector.broadcast %cst_5 : f32 to vector<8x32xf32>
    %11 = arith.maximumf %7, %10 : vector<8x32xf32>
    %cst_6 = arith.constant 0.000000e+00 : f32
    %12 = vector.broadcast %cst_6 : f32 to vector<8x32xf32>
    %13 = arith.maximumf %8, %12 : vector<8x32xf32>
    %c0_7 = arith.constant 0 : index
    %c0_8 = arith.constant 0 : index
    %14 = vector.load %arg5[%c0_7, %c0_8] : memref<32x32xf32, #tpu.memory_space<vmem>>, vector<32x32xf32>
    %cst_9 = arith.constant dense<0.000000e+00> : vector<8x32xf32>
    %15 = tpu.matmul %11, %14, %cst_9 {dimension_numbers = #tpu.dot_dimension_numbers<[1], [0], [0], [1], [0, 0, 1, 1], [], []>} : vector<8x32xf32>, vector<32x32xf32>, vector<8x32xf32> -> vector<8x32xf32>
    %16 = arith.extf %4 : vector<8x32xbf16> to vector<8x32xf32>
    %17 = arith.addf %16, %15 : vector<8x32xf32>
    %18 = arith.truncf %17 : vector<8x32xf32> to vector<8x32xbf16>
    %c0_10 = arith.constant 0 : index
    %c0_11 = arith.constant 0 : index
    %c0_12 = arith.constant 0 : index
    %19 = vector.load %arg4[%c0_10, %c0_11, %c0_12] : memref<1x8x32xbf16, #tpu.memory_space<vmem>>, vector<1x8x32xbf16>
    %20 = vector.shape_cast %19 : vector<1x8x32xbf16> to vector<8x32xbf16>
    %21 = vector.shape_cast %18 : vector<8x32xbf16> to vector<1x8x32xbf16>
    tpu.vector_store %arg4[%c0_10, %c0_11, %c0_12], %21 {strides = array<i32>} : memref<1x8x32xbf16, #tpu.memory_space<vmem>>, vector<1x8x32xbf16>,
    %22 = arith.truncf %13 : vector<8x32xf32> to vector<8x32xbf16>
    %23 = arith.truncf %9 : vector<8x32xf32> to vector<8x32xbf16>
    %cst_13 = arith.constant dense<0.000000e+00> : vector<32x32xf32>
    %24 = tpu.matmul %22, %23, %cst_13 {dimension_numbers = #tpu.dot_dimension_numbers<[0], [0], [1], [1], [0, 1, 1, 1], [], []>} : vector<8x32xbf16>, vector<8x32xbf16>, vector<32x32xf32> -> vector<32x32xf32>
    %25 = arith.addf %14, %24 : vector<32x32xf32>
    %c0_14 = arith.constant 0 : index
    %c0_15 = arith.constant 0 : index
    %26 = vector.load %arg5[%c0_14, %c0_15] : memref<32x32xf32, #tpu.memory_space<vmem>>, vector<32x32xf32>
    tpu.vector_store %arg5[%c0_14, %c0_15], %25 {strides = array<i32>} : memref<32x32xf32, #tpu.memory_space<vmem>>, vector<32x32xf32>,
    return
  }
  func.func @transform_0(%arg0: i32, %arg1: i32) -> (i32, i32, i32) {
    %c0_i32 = arith.constant 0 : i32
    %c0_i32_0 = arith.constant 0 : i32
    return %arg0, %arg1, %c0_i32 : i32, i32, i32
  }
  func.func @transform_1(%arg0: i32, %arg1: i32) -> (i32, i32) {
    %c0_i32 = arith.constant 0 : i32
    %c0_i32_0 = arith.constant 0 : i32
    %c0_i32_1 = arith.constant 0 : i32
    return %c0_i32, %c0_i32_0 : i32, i32
  }
  func.func @transform_2(%arg0: i32, %arg1: i32) -> (i32, i32, i32) {
    %c0_i32 = arith.constant 0 : i32
    %c0_i32_0 = arith.constant 0 : i32
    return %arg0, %arg1, %c0_i32 : i32, i32, i32
  }
}

</mosaic_0001>

<llo_original>
// kernel: tpu_custom_call.1
$region0: #{tpu_custom_call.1}
  #allocation0 [shape = 'u32[]', space=smem, size = 0x4, offset = 0x4, fixed_abs, tag = 'smem constant byte address 0x4 - core index']
  #allocation1 [shape = 'u32[72,128]{1,0:T(1,128)}', space=vmem, size = 0x9000, scoped, tag = 'internal scratch']
  #allocation2 [shape = 'f32[32,32]{1,0:T(8,128)}', space=vmem, size = 0x4000, scoped, tag = 'scratch operand']
  %s0 = inlined_call_operand.hbm [shape: bf16[2,24,32], index: 0, kind: input, shape index: {}]
  %s1 = inlined_call_operand.hbm [shape: bf16[32,96], index: 1, kind: input, shape index: {}]
  %s2 = inlined_call_operand.hbm [shape: bf16[2,24,32], index: 2, kind: output, shape index: {}]
  %s3 = sld [smem:[#allocation0]]
  $region53: #{tpu_custom_call.1} parent=0
    _
  %s5 = ssub.s32 1, %s3
  %s6 = scalar_select 0, %s5, %s3
  $region1: #{tpu_custom_call.1} parent=0
    #allocation3 [shape = 'u8[4096]{0}', space=vmem, size = 0x1000, scoped, tag = 'input window, operand 0']
    #allocation4 [shape = 's32[2]{0}', space=sflag, size = 0x8, scoped, tag = 'scoped memory for tpu_custom_call.1']
    #allocation5 [shape = 's32[2]{0}', space=sflag, size = 0x8, scoped, tag = 'scoped memory for tpu_custom_call.1']
    #allocation6 [shape = 'u8[8192]{0}', space=vmem, size = 0x2000, scoped, tag = 'input window, operand 1, single buffered']
    #allocation7 [shape = 's32[1]{0}', space=sflag, size = 0x4, scoped, tag = 'scoped memory for tpu_custom_call.1']
    #allocation8 [shape = 'u8[4096]{0}', space=vmem, size = 0x1000, scoped, tag = 'output window, operand 0']
    %7 = vsyncpa [#allocation4], 0
    %s8 = scalar_lea.sflag [#allocation4], 1
    %9 = vsyncpa %s8, 0
    %10 = vsyncpa [#allocation7], 0
    %11 = vsyncpa [#allocation5], 0
    %s12 = scalar_lea.sflag [#allocation5], 1
    %13 = vsyncpa %s12, 0
    loop: start=0, step=1, limit=8
    $region2: #{tpu_custom_call.1} parent=1 // loop_pre_header
      _
    $region3: #{tpu_custom_call.1} parent=1 // loop_header
      %s15 = sphi 0, %s19
      %p16 = scmp.ge.s32.totalorder %s15, 8
      %s22 = sphi 0, %s34
      %s23 = sphi 0, %s30
      %s24 = sphi 0, %s22
      %s25 = sphi 0, %s23
      %s26 = sphi 0, %s24
      %s27 = sphi 0, %s25
      %s39 = sphi 0, %s41
      %s42 = sphi 0, %s39
      %s43 = sphi 0, %s42
      %s59 = sphi 0, %s43
      %s63 = sphi 0, %s63
      %s65 = sphi 0, %s63
      %s66 = sphi 0, %s65
      %s80 = sphi 0, %s66
      %s88 = sphi 0, %s90
      %s91 = sphi 0, %s88
      %s92 = sphi 0, %s91
      %s108 = sphi 0, %s92
    $region4: #{tpu_custom_call.1} parent=1 // loop_header_branch
      %18 = sbr.rel (%p16) target = $region8
    $region5: #{tpu_custom_call.1} parent=1 // loop_body
      %s20 = ssub.s32 %s15, 1
      %s21 = ssub.s32 %s15, 2
      %s28 = sadd.s32 1, %s23
      %p29 = scmp.ge.s32.totalorder %s28, 3
      %s30 = scalar_select %p29, 0, %s28
      %s31 = sadd.s32 1, %s22
      %s32 = scalar_select %p29, %s31, %s22
      %p33 = scmp.ge.s32.totalorder %s32, 2
      %s34 = scalar_select %p33, 0, %s32
      %s35 = ssub.s32 %s22, %s34
      %s36 = ssub.s32 %s23, %s30
      %s37 = sor.u32 %s35, %s36
      %p38 = scmp.eq.s32.totalorder %s37, 0
      %s40 = sadd.s32 %s39, 1
      %s41 = scalar_select %p38, %s39, %s40
      %p44 = pneg %p38
      %p45 = scmp.eq.s32.totalorder %s15, 5
      %p46 = por %p44, %p45
      %p47 = scmp.ne.s32.totalorder %s39, %s42
      %p48 = scmp.eq.s32.totalorder %s15, 0
      %p49 = por %p47, %p48
      %p50 = scmp.ne.s32.totalorder %s39, %s42
      %p51 = scmp.eq.s32.totalorder %s20, 5
      %p52 = por %p50, %p51
      %p53 = scmp.ne.s32.totalorder %s42, %s43
      %p54 = scmp.eq.s32.totalorder %s20, 0
      %p55 = por %p53, %p54
      %p56 = scmp.ne.s32.totalorder %s42, %s43
      %p57 = scmp.eq.s32.totalorder %s21, 5
      %p58 = por %p56, %p57
      %p60 = scmp.ne.s32.totalorder %s43, %s59
      %p61 = scmp.eq.s32.totalorder %s21, 0
      %p62 = por %p60, %p61
      %s64 = sadd.s32 %s63, 1
      %p67 = scmp.eq.s32.totalorder %s15, 5
      %p68 = scmp.ne.s32.totalorder %s63, %s65
      %p69 = scmp.eq.s32.totalorder %s15, 0
      %p70 = por %p68, %p69
      %p71 = scmp.ne.s32.totalorder %s63, %s65
      %p72 = scmp.eq.s32.totalorder %s20, 5
      %p73 = por %p71, %p72
      %p74 = scmp.ne.s32.totalorder %s65, %s66
      %p75 = scmp.eq.s32.totalorder %s20, 0
      %p76 = por %p74, %p75
      %p77 = scmp.ne.s32.totalorder %s65, %s66
      %p78 = scmp.eq.s32.totalorder %s21, 5
      %p79 = por %p77, %p78
      %p81 = scmp.ne.s32.totalorder %s66, %s80
      %p82 = scmp.eq.s32.totalorder %s21, 0
      %p83 = por %p81, %p82
      %s84 = ssub.s32 %s22, %s34
      %s85 = ssub.s32 %s23, %s30
      %s86 = sor.u32 %s84, %s85
      %p87 = scmp.eq.s32.totalorder %s86, 0
      %s89 = sadd.s32 %s88, 1
      %s90 = scalar_select %p87, %s88, %s89
      %p93 = pneg %p87
      %p94 = scmp.eq.s32.totalorder %s15, 5
      %p95 = por %p93, %p94
      %p96 = scmp.ne.s32.totalorder %s88, %s91
      %p97 = scmp.eq.s32.totalorder %s15, 0
      %p98 = por %p96, %p97
      %p99 = scmp.ne.s32.totalorder %s88, %s91
      %p100 = scmp.eq.s32.totalorder %s20, 5
      %p101 = por %p99, %p100
      %p102 = scmp.ne.s32.totalorder %s91, %s92
      %p103 = scmp.eq.s32.totalorder %s20, 0
      %p104 = por %p102, %p103
      %p105 = scmp.ne.s32.totalorder %s91, %s92
      %p106 = scmp.eq.s32.totalorder %s21, 5
      %p107 = por %p105, %p106
      %p109 = scmp.ne.s32.totalorder %s92, %s108
      %p110 = scmp.eq.s32.totalorder %s21, 0
      %p111 = por %p109, %p110
      %p112 = scmp.le.s32.totalorder 1, %s15
      %p113 = scmp.lt.s32.totalorder %s15, 7
      %p114 = pnand %p112, %p113
      %p115 = pneg %p114
      // Predicated region
      $region9: #{tpu_custom_call.1} parent=5 // pred_check
        _
      $region10: #{tpu_custom_call.1} parent=5 // pred_check_branch
        %117 = sbr.rel (%p114) target = $region12
      $region11: #{tpu_custom_call.1} parent=5 // pred_region
        %s118 = ssub.s32 %s15, 1
        // Predicated region
        $region13: #{tpu_custom_call.1} parent=11 // pred_check
          %p119 = pneg %p76
        $region14: #{tpu_custom_call.1} parent=11 // pred_check_branch
          %121 = sbr.rel (%p119) target = $region16
        $region15: #{tpu_custom_call.1} parent=11 // pred_region
          %123 = vsyncadd [#allocation7], 0
          %s124 = sshll.u32 %s1, 4
          %s125 = int_to_ptr.hbm [resolvable:$true] %s124
          %s126 = sshll.u32 [#allocation6], 4
          %s127 = int_to_ptr.vmem [resolvable:$true] %s126
          %132 = dma.hbm_to_vmem [thread:$0]  %s125, 256, %s127, [#allocation7], 64, 64, 4
        $region16: #{tpu_custom_call.1} parent=11 // pred_fallthru
          _
      $region12: #{tpu_custom_call.1} parent=5 // pred_fallthru
        _
      %p133 = scmp.lt.s32.totalorder %s15, 6
      // Predicated region
      $region17: #{tpu_custom_call.1} parent=5 // pred_check
        %p134 = pneg %p133
      $region18: #{tpu_custom_call.1} parent=5 // pred_check_branch
        %136 = sbr.rel (%p134) target = $region20
      $region19: #{tpu_custom_call.1} parent=5 // pred_region
        // Predicated region
        $region21: #{tpu_custom_call.1} parent=19 // pred_check
          %p137 = pneg %p49
        $region22: #{tpu_custom_call.1} parent=19 // pred_check_branch
          %139 = sbr.rel (%p137) target = $region24
        $region23: #{tpu_custom_call.1} parent=19 // pred_region
          %s140 = sand.u32 %s39, 1
          %s141 = scalar_lea.sflag [#allocation4], %s140
          %s142 = sand.u32 %s39, 1
          %s143 = smul.addr %s142, 4
          %s144 = scalar_lea.vmem [#allocation3], %s143
          %146 = vsyncadd %s141, 0
          %s147 = smul.addr %s22, 3
          %s148 = sadd.s32 %s23, %s147
          %s149 = smul.addr %s148, 4
          %s150 = scalar_lea.hbm %s0, %s149
          %s152 = sshll.u32 %s150, 4
          %s153 = int_to_ptr.hbm [resolvable:$true] %s152
          %s154 = sshll.u32 %s144, 4
          %s155 = int_to_ptr.vmem [resolvable:$true] %s154
          %157 = dma.hbm_to_vmem [thread:$0]  %s153, 64, %s155, %s141
        $region24: #{tpu_custom_call.1} parent=19 // pred_fallthru
          _
      $region20: #{tpu_custom_call.1} parent=5 // pred_fallthru
        _
      %p158 = scmp.le.s32.totalorder 1, %s15
      %p159 = scmp.lt.s32.totalorder %s15, 7
      %p160 = pnand %p158, %p159
      %p161 = pneg %p160
      // Predicated region
      $region25: #{tpu_custom_call.1} parent=5 // pred_check
        _
      $region26: #{tpu_custom_call.1} parent=5 // pred_check_branch
        %163 = sbr.rel (%p160) target = $region28
      $region27: #{tpu_custom_call.1} parent=5 // pred_region
        %s164 = ssub.s32 %s15, 1
        %s165 = sand.u32 %s42, 1
        %s166 = scalar_lea.sflag [#allocation4], %s165
        %s167 = sand.u32 %s42, 1
        %s168 = smul.addr %s167, 4
        %s169 = scalar_lea.vmem [#allocation3], %s168
        // Predicated region
        $region29: #{tpu_custom_call.1} parent=27 // pred_check
          %p170 = pneg %p55
        $region30: #{tpu_custom_call.1} parent=27 // pred_check_branch
          %172 = sbr.rel (%p170) target = $region32
        $region31: #{tpu_custom_call.1} parent=27 // pred_region
          %174 = dma.done %s166, 64
        $region32: #{tpu_custom_call.1} parent=27 // pred_fallthru
          _
        // Predicated region
        $region33: #{tpu_custom_call.1} parent=27 // pred_check
          %p175 = pneg %p76
        $region34: #{tpu_custom_call.1} parent=27 // pred_check_branch
          %177 = sbr.rel (%p175) target = $region36
        $region35: #{tpu_custom_call.1} parent=27 // pred_region
          %179 = dma.done [#allocation7], 256
        $region36: #{tpu_custom_call.1} parent=27 // pred_fallthru
          _
        %s180 = sand.u32 %s42, 1
        %s181 = scalar_lea.sflag [#allocation4], %s180
        %s182 = sand.u32 %s42, 1
        %s183 = smul.addr %s182, 4
        %s184 = scalar_lea.vmem [#allocation3], %s183
        %p185 = pneg %p55
        %p186 = pneg %p52
        %p187 = pneg %p76
        %p188 = pneg %p73
        %p189 = pneg %p104
        %p190 = pneg %p101
        %s191 = sand.u32 %s91, 1
        %s192 = scalar_lea.sflag [#allocation5], %s191
        %s193 = sand.u32 %s91, 1
        %s194 = smul.addr %s193, 4
        %s195 = scalar_lea.vmem [#allocation8], %s194
        %p197 = scmp.eq.s32.totalorder %s25, 0
        // Predicated region
        $region37: #{tpu_custom_call.1} parent=27 // pred_check
          %p198 = pneg %p197
        $region38: #{tpu_custom_call.1} parent=27 // pred_check_branch
          %200 = sbr.rel (%p198) target = $region40
        $region39: #{tpu_custom_call.1} parent=27 // pred_region
          %vm201 = vcmask 261120
          %202 = vst.msk [vmem:[#allocation2] sm:$0xff] %vm201, 0.0
          %203 = vst.msk [vmem:[#allocation2 + $0x8] sm:$0xff] %vm201, 0.0
          %204 = vst.msk [vmem:[#allocation2 + $0x10] sm:$0xff] %vm201, 0.0
          %205 = vst.msk [vmem:[#allocation2 + $0x18] sm:$0xff] %vm201, 0.0
        $region40: #{tpu_custom_call.1} parent=27 // pred_fallthru
          _
        %v206 = vld [vmem:[%s169] sm:$0xf]
        %v207 = vld [vmem:[#allocation6] sm:$0xf]
        %v208 = vld [vmem:[#allocation6 + $0x4] sm:$0xf]
        %v209 = vld [vmem:[#allocation6 + $0x8] sm:$0xf]
        %v210 = vld [vmem:[#allocation6 + $0xc] sm:$0xf]
        %v215 = vunpack.c.l.b16 %v207
        %v216 = vunpack.c.l.b16 %v208
        %v217 = vunpack.c.l.b16 %v209
        %v218 = vunpack.c.l.b16 %v210
        %v219 = vpack.c.b16 %v216, %v215
        %v220 = vpack.c.b16 %v218, %v217
        %vm223 = vcmask 261120
        %v225 = vsel %vm223, %v206, 0
        %227 = vmatpush.bf16.msra.mxu0 0
        %228 = vmatpush.bf16.msra.mxu0 0
        %229 = vmatpush.bf16.msra.mxu0 0
        %230 = vmatpush.bf16.msra.mxu0 0
        %231 = vmatpush.bf16.msra.mxu0 0
        %232 = vmatpush.bf16.msra.mxu0 0
        %233 = vmatpush.bf16.msra.mxu0 %v220
        %234 = vmatpush.bf16.msra.mxu0 %v219
        %235 = vmatmul.bf16.gmra.mxu0 %v225
        %v236 = vpop.f32.mrf.mxu0
        %v237 = vadd.f32 0.0, %v236
        %v238 = vpop.f32.mrf.mxu0
        %239 = vdwg.mxu0
        %v240 = vmax.f32 %v237, 0.0
        %v241 = vld [vmem:[#allocation2] sm:$0xff]
        %v242 = vld [vmem:[#allocation2 + $0x8] sm:$0xff]
        %v243 = vld [vmem:[#allocation2 + $0x10] sm:$0xff]
        %v244 = vld [vmem:[#allocation2 + $0x18] sm:$0xff]
        %v246 = vsel %vm223, %v240, 0
        %248 = vmatpush.msra.mxu0 0.0
        %249 = vmatpush.msra.mxu0 0.0
        %250 = vmatpush.msra.mxu0 0.0
        %251 = vmatpush.msra.mxu0 0.0
        %252 = vmatpush.msra.mxu0 0.0
        %253 = vmatpush.msra.mxu0 0.0
        %254 = vmatpush.msra.mxu0 0.0
        %255 = vmatpush.msra.mxu0 0.0
        %256 = vmatpush.msra.mxu0 0.0
        %257 = vmatpush.msra.mxu0 0.0
        %258 = vmatpush.msra.mxu0 0.0
        %259 = vmatpush.msra.mxu0 0.0
        %260 = vmatpush.msra.mxu0 %v244
        %261 = vmatpush.msra.mxu0 %v243
        %262 = vmatpush.msra.mxu0 %v242
        %263 = vmatpush.msra.mxu0 %v241
        %264 = vmatmul.f32.gmra.mxu0 %v246
        %v265 = vpop.f32.mrf.mxu0
        %v266 = vadd.f32 0.0, %v265
        %267 = vdwg.mxu0
        %v268 = vunpack.c.l.bf16 %v206
        %v269 = vadd.f32 %v268, %v266
        %v270 = vpack.c.bf16 %v269, %v269
        %vm271 = vcmask 257024
        %272 = vst.msk [vmem:[%s195] sm:$0xf] %vm271, %v270
        %v273 = vpack.c.bf16 %v240, %v240
        %v274 = vpack.c.bf16 %v237, %v237
        %276 = vrot.lane.b32.xlu0 %v273, 96
        %v277 = vpop.permute.xlu0 %276
        %279 = vxpose.xlu0.c.b16.start [1/8] %v277, 128
        %280 = vxpose.xlu0.c.b16.cont [2/8] 0, 128
        %281 = vxpose.xlu0.c.b16.cont [3/8] 0, 128
        %282 = vxpose.xlu0.c.b16.cont [4/8] 0, 128
        %283 = vxpose.xlu0.c.b16.cont [5/8] 0, 128
        %284 = vxpose.xlu0.c.b16.cont [6/8] 0, 128
        %285 = vxpose.xlu0.c.b16.cont [7/8] 0, 128
        %286 = vxpose.xlu0.c.b16.end [8/8] 0, 128
        %v287 = vpop.trf.xlu0
        %v288 = vpop.trf.xlu0
        %v289 = vpop.trf.xlu0
        %v290 = vpop.trf.xlu0
        %v291 = vpop.trf.xlu0
        %v292 = vpop.trf.xlu0
        %v293 = vpop.trf.xlu0
        %v294 = vpop.trf.xlu0
        %296 = vrot.lane.b32.xlu0 %v274, 64
        %v297 = vpop.permute.xlu0 %296
        %vm298 = vcmask 64512
        %v300 = vsel %vm298, %v287, 0
        %v303 = vsel %vm298, %v288, 0
        %vm305 = vcmask 1043456
        %v307 = vsel %vm305, %v297, 0
        %309 = vmatpush.bf16.msra.mxu0 0
        %310 = vmatpush.bf16.msra.mxu0 0
        %311 = vmatpush.bf16.msra.mxu0 0
        %312 = vmatpush.bf16.msra.mxu0 0
        %313 = vmatpush.bf16.msra.mxu0 0
        %314 = vmatpush.bf16.msra.mxu0 0
        %315 = vmatpush.bf16.msra.mxu0 0
        %316 = vmatpush.bf16.msra.mxu0 %v307
        %317 = vmatmul.bf16.gmra.mxu0 %v300
        %v318 = vpop.f32.mrf.mxu0
        %v319 = vadd.f32 0.0, %v318
        %v320 = vpop.f32.mrf.mxu0
        %v321 = vadd.f32 0.0, %v320
        %322 = vmatmul.bf16.gmra.mxu0 %v303
        %v323 = vpop.f32.mrf.mxu0
        %v324 = vadd.f32 0.0, %v323
        %v325 = vpop.f32.mrf.mxu0
        %v326 = vadd.f32 0.0, %v325
        %327 = vdwg.mxu0
        %v328 = vadd.f32 %v241, %v319
        %v329 = vadd.f32 %v242, %v321
        %v330 = vadd.f32 %v243, %v324
        %v331 = vadd.f32 %v244, %v326
        %332 = vst.msk [vmem:[#allocation2] sm:$0xff] %vm223, %v328
        %333 = vst.msk [vmem:[#allocation2 + $0x8] sm:$0xff] %vm223, %v329
        %334 = vst.msk [vmem:[#allocation2 + $0x10] sm:$0xff] %vm223, %v330
        %335 = vst.msk [vmem:[#allocation2 + $0x18] sm:$0xff] %vm223, %v331
        %s336 = sand.u32 %s91, 1
        %s337 = scalar_lea.sflag [#allocation5], %s336
        %s338 = sand.u32 %s91, 1
        %s339 = smul.addr %s338, 4
        %s340 = scalar_lea.vmem [#allocation8], %s339
        // Predicated region
        $region41: #{tpu_custom_call.1} parent=27 // pred_check
          %p341 = pneg %p101
        $region42: #{tpu_custom_call.1} parent=27 // pred_check_branch
          %343 = sbr.rel (%p341) target = $region44
        $region43: #{tpu_custom_call.1} parent=27 // pred_region
          %345 = vsyncadd %s337, 0
          %s346 = smul.addr %s24, 3
          %s347 = sadd.s32 %s25, %s346
          %s348 = smul.addr %s347, 4
          %s349 = scalar_lea.hbm %s2, %s348
          %s351 = sshll.u32 %s340, 4
          %s352 = int_to_ptr.vmem [resolvable:$true] %s351
          %s353 = sshll.u32 %s349, 4
          %s354 = int_to_ptr.hbm [resolvable:$true] %s353
          %356 = dma.vmem_to_hbm [thread:$0]  %s352, 64, %s354, %s337
        $region44: #{tpu_custom_call.1} parent=27 // pred_fallthru
          _
      $region28: #{tpu_custom_call.1} parent=5 // pred_fallthru
        _
      %p357 = scmp.le.s32.totalorder 2, %s15
      // Predicated region
      $region45: #{tpu_custom_call.1} parent=5 // pred_check
        %p358 = pneg %p357
      $region46: #{tpu_custom_call.1} parent=5 // pred_check_branch
        %360 = sbr.rel (%p358) target = $region48
      $region47: #{tpu_custom_call.1} parent=5 // pred_region
        %s361 = ssub.s32 %s15, 2
        // Predicated region
        $region49: #{tpu_custom_call.1} parent=47 // pred_check
          %p362 = pneg %p107
        $region50: #{tpu_custom_call.1} parent=47 // pred_check_branch
          %364 = sbr.rel (%p362) target = $region52
        $region51: #{tpu_custom_call.1} parent=47 // pred_region
          %s365 = sand.u32 %s92, 1
          %s366 = scalar_lea.sflag [#allocation5], %s365
          %s367 = sand.u32 %s92, 1
          %s368 = smul.addr %s367, 4
          %s369 = scalar_lea.vmem [#allocation8], %s368
          %371 = dma.done %s366, 64
        $region52: #{tpu_custom_call.1} parent=47 // pred_fallthru
          _
      $region48: #{tpu_custom_call.1} parent=5 // pred_fallthru
        _
    $region6: #{tpu_custom_call.1} parent=1 // loop_footer
      %s19 = sadd.s32 1, %s15
    $region7: #{tpu_custom_call.1} parent=1 // loop_footer_branch
      %14 = sbr.rel target = $region3
    $region8: #{tpu_custom_call.1} parent=1 // loop_exit
      _
    %372 = vsyncpa [#allocation4], 1
    %s373 = scalar_lea.sflag [#allocation4], 1
    %374 = vsyncpa %s373, 1
    %375 = vsyncpa [#allocation7], 1
    %376 = vsyncpa [#allocation5], 1
    %s377 = scalar_lea.sflag [#allocation5], 1
    %378 = vsyncpa %s377, 1

// kernel: tpu_custom_call.1
$region0: #{tpu_custom_call.1}
  #allocation0 [shape = 'u32[]', space=smem, size = 0x4, offset = 0x4, fixed_abs, tag = 'smem constant byte address 0x4 - core index']
  #allocation1 [shape = 'u32[72,128]{1,0:T(1,128)}', space=vmem, size = 0x9000, scoped, tag = 'internal scratch']
  #allocation2 [shape = 'f32[32,32]{1,0:T(8,128)}', space=vmem, size = 0x4000, scoped, tag = 'scratch operand']
  %s0 = inlined_call_operand.hbm [shape: bf16[2,24,32], index: 0, kind: input, shape index: {}]
  %s1 = inlined_call_operand.hbm [shape: bf16[32,96], index: 1, kind: input, shape index: {}]
  %s2 = inlined_call_operand.hbm [shape: bf16[2,24,32], index: 2, kind: output, shape index: {}]
  %s3 = sld [smem:[#allocation0]]
  $region53: #{tpu_custom_call.1} parent=0
    _
  %s5 = ssub.s32 1, %s3
  %s6 = scalar_select 0, %s5, %s3
  $region1: #{tpu_custom_call.1} parent=0
    #allocation3 [shape = 'u8[4096]{0}', space=vmem, size = 0x1000, scoped, tag = 'input window, operand 0']
    #allocation4 [shape = 's32[2]{0}', space=sflag, size = 0x8, scoped, tag = 'scoped memory for tpu_custom_call.1']
    #allocation5 [shape = 's32[2]{0}', space=sflag, size = 0x8, scoped, tag = 'scoped memory for tpu_custom_call.1']
    #allocation6 [shape = 'u8[8192]{0}', space=vmem, size = 0x2000, scoped, tag = 'input window, operand 1, single buffered']
    #allocation7 [shape = 's32[1]{0}', space=sflag, size = 0x4, scoped, tag = 'scoped memory for tpu_custom_call.1']
    #allocation8 [shape = 'u8[4096]{0}', space=vmem, size = 0x1000, scoped, tag = 'output window, operand 0']
    %7 = vsyncpa [#allocation4], 0
    %s8 = scalar_lea.sflag [#allocation4], 1
    %9 = vsyncpa %s8, 0
    %10 = vsyncpa [#allocation7], 0
    %11 = vsyncpa [#allocation5], 0
    %s12 = scalar_lea.sflag [#allocation5], 1
    %13 = vsyncpa %s12, 0
    loop: start=0, step=1, limit=8
    $region2: #{tpu_custom_call.1} parent=1 // loop_pre_header
      _
    $region3: #{tpu_custom_call.1} parent=1 // loop_header
      %s15 = sphi 0, %s19
      %p16 = scmp.ge.s32.totalorder %s15, 8
      %s22 = sphi 0, %s34
      %s23 = sphi 0, %s30
      %s24 = sphi 0, %s22
      %s25 = sphi 0, %s23
      %s26 = sphi 0, %s24
      %s27 = sphi 0, %s25
      %s39 = sphi 0, %s41
      %s42 = sphi 0, %s39
      %s43 = sphi 0, %s42
      %s59 = sphi 0, %s43
      %s63 = sphi 0, %s63
      %s65 = sphi 0, %s63
      %s66 = sphi 0, %s65
      %s80 = sphi 0, %s66
      %s88 = sphi 0, %s90
      %s91 = sphi 0, %s88
      %s92 = sphi 0, %s91
      %s108 = sphi 0, %s92
    $region4: #{tpu_custom_call.1} parent=1 // loop_header_branch
      %18 = sbr.rel (%p16) target = $region8
    $region5: #{tpu_custom_call.1} parent=1 // loop_body
      %s20 = ssub.s32 %s15, 1
      %s21 = ssub.s32 %s15, 2
      %s28 = sadd.s32 1, %s23
      %p29 = scmp.ge.s32.totalorder %s28, 3
      %s30 = scalar_select %p29, 0, %s28
      %s31 = sadd.s32 1, %s22
      %s32 = scalar_select %p29, %s31, %s22
      %p33 = scmp.ge.s32.totalorder %s32, 2
      %s34 = scalar_select %p33, 0, %s32
      %s35 = ssub.s32 %s22, %s34
      %s36 = ssub.s32 %s23, %s30
      %s37 = sor.u32 %s35, %s36
      %p38 = scmp.eq.s32.totalorder %s37, 0
      %s40 = sadd.s32 %s39, 1
      %s41 = scalar_select %p38, %s39, %s40
      %p44 = pneg %p38
      %p45 = scmp.eq.s32.totalorder %s15, 5
      %p46 = por %p44, %p45
      %p47 = scmp.ne.s32.totalorder %s39, %s42
      %p48 = scmp.eq.s32.totalorder %s15, 0
      %p49 = por %p47, %p48
      %p50 = scmp.ne.s32.totalorder %s39, %s42
      %p51 = scmp.eq.s32.totalorder %s20, 5
      %p52 = por %p50, %p51
      %p53 = scmp.ne.s32.totalorder %s42, %s43
      %p54 = scmp.eq.s32.totalorder %s20, 0
      %p55 = por %p53, %p54
      %p56 = scmp.ne.s32.totalorder %s42, %s43
      %p57 = scmp.eq.s32.totalorder %s21, 5
      %p58 = por %p56, %p57
      %p60 = scmp.ne.s32.totalorder %s43, %s59
      %p61 = scmp.eq.s32.totalorder %s21, 0
      %p62 = por %p60, %p61
      %s64 = sadd.s32 %s63, 1
      %p67 = scmp.eq.s32.totalorder %s15, 5
      %p68 = scmp.ne.s32.totalorder %s63, %s65
      %p69 = scmp.eq.s32.totalorder %s15, 0
      %p70 = por %p68, %p69
      %p71 = scmp.ne.s32.totalorder %s63, %s65
      %p72 = scmp.eq.s32.totalorder %s20, 5
      %p73 = por %p71, %p72
      %p74 = scmp.ne.s32.totalorder %s65, %s66
      %p75 = scmp.eq.s32.totalorder %s20, 0
      %p76 = por %p74, %p75
      %p77 = scmp.ne.s32.totalorder %s65, %s66
      %p78 = scmp.eq.s32.totalorder %s21, 5
      %p79 = por %p77, %p78
      %p81 = scmp.ne.s32.totalorder %s66, %s80
      %p82 = scmp.eq.s32.totalorder %s21, 0
      %p83 = por %p81, %p82
      %s84 = ssub.s32 %s22, %s34
      %s85 = ssub.s32 %s23, %s30
      %s86 = sor.u32 %s84, %s85
      %p87 = scmp.eq.s32.totalorder %s86, 0
      %s89 = sadd.s32 %s88, 1
      %s90 = scalar_select %p87, %s88, %s89
      %p93 = pneg %p87
      %p94 = scmp.eq.s32.totalorder %s15, 5
      %p95 = por %p93, %p94
      %p96 = scmp.ne.s32.totalorder %s88, %s91
      %p97 = scmp.eq.s32.totalorder %s15, 0
      %p98 = por %p96, %p97
      %p99 = scmp.ne.s32.totalorder %s88, %s91
      %p100 = scmp.eq.s32.totalorder %s20, 5
      %p101 = por %p99, %p100
      %p102 = scmp.ne.s32.totalorder %s91, %s92
      %p103 = scmp.eq.s32.totalorder %s20, 0
      %p104 = por %p102, %p103
      %p105 = scmp.ne.s32.totalorder %s91, %s92
      %p106 = scmp.eq.s32.totalorder %s21, 5
      %p107 = por %p105, %p106
      %p109 = scmp.ne.s32.totalorder %s92, %s108
      %p110 = scmp.eq.s32.totalorder %s21, 0
      %p111 = por %p109, %p110
      %p112 = scmp.le.s32.totalorder 1, %s15
      %p113 = scmp.lt.s32.totalorder %s15, 7
      %p114 = pnand %p112, %p113
      %p115 = pneg %p114
      // Predicated region
      $region9: #{tpu_custom_call.1} parent=5 // pred_check
        _
      $region10: #{tpu_custom_call.1} parent=5 // pred_check_branch
        %117 = sbr.rel (%p114) target = $region12
      $region11: #{tpu_custom_call.1} parent=5 // pred_region
        %s118 = ssub.s32 %s15, 1
        // Predicated region
        $region13: #{tpu_custom_call.1} parent=11 // pred_check
          %p119 = pneg %p76
        $region14: #{tpu_custom_call.1} parent=11 // pred_check_branch
          %121 = sbr.rel (%p119) target = $region16
        $region15: #{tpu_custom_call.1} parent=11 // pred_region
          %123 = vsyncadd [#allocation7], 0
          %s124 = sshll.u32 %s1, 4
          %s125 = int_to_ptr.hbm [resolvable:$true] %s124
          %s126 = sshll.u32 [#allocation6], 4
          %s127 = int_to_ptr.vmem [resolvable:$true] %s126
          %132 = dma.hbm_to_vmem [thread:$0]  %s125, 256, %s127, [#allocation7], 64, 64, 4
        $region16: #{tpu_custom_call.1} parent=11 // pred_fallthru
          _
      $region12: #{tpu_custom_call.1} parent=5 // pred_fallthru
        _
      %p133 = scmp.lt.s32.totalorder %s15, 6
      // Predicated region
      $region17: #{tpu_custom_call.1} parent=5 // pred_check
        %p134 = pneg %p133
      $region18: #{tpu_custom_call.1} parent=5 // pred_check_branch
        %136 = sbr.rel (%p134) target = $region20
      $region19: #{tpu_custom_call.1} parent=5 // pred_region
        // Predicated region
        $region21: #{tpu_custom_call.1} parent=19 // pred_check
          %p137 = pneg %p49
        $region22: #{tpu_custom_call.1} parent=19 // pred_check_branch
          %139 = sbr.rel (%p137) target = $region24
        $region23: #{tpu_custom_call.1} parent=19 // pred_region
          %s140 = sand.u32 %s39, 1
          %s141 = scalar_lea.sflag [#allocation4], %s140
          %s142 = sand.u32 %s39, 1
          %s143 = smul.addr %s142, 4
          %s144 = scalar_lea.vmem [#allocation3], %s143
          %146 = vsyncadd %s141, 0
          %s147 = smul.addr %s22, 3
          %s148 = sadd.s32 %s23, %s147
          %s149 = smul.addr %s148, 4
          %s150 = scalar_lea.hbm %s0, %s149
          %s152 = sshll.u32 %s150, 4
          %s153 = int_to_ptr.hbm [resolvable:$true] %s152
          %s154 = sshll.u32 %s144, 4
          %s155 = int_to_ptr.vmem [resolvable:$true] %s154
          %157 = dma.hbm_to_vmem [thread:$0]  %s153, 64, %s155, %s141
        $region24: #{tpu_custom_call.1} parent=19 // pred_fallthru
          _
      $region20: #{tpu_custom_call.1} parent=5 // pred_fallthru
        _
      %p158 = scmp.le.s32.totalorder 1, %s15
      %p159 = scmp.lt.s32.totalorder %s15, 7
      %p160 = pnand %p158, %p159
      %p161 = pneg %p160
      // Predicated region
      $region25: #{tpu_custom_call.1} parent=5 // pred_check
        _
      $region26: #{tpu_custom_call.1} parent=5 // pred_check_branch
        %163 = sbr.rel (%p160) target = $region28
      $region27: #{tpu_custom_call.1} parent=5 // pred_region
        %s164 = ssub.s32 %s15, 1
        %s165 = sand.u32 %s42, 1
        %s166 = scalar_lea.sflag [#allocation4], %s165
        %s167 = sand.u32 %s42, 1
        %s168 = smul.addr %s167, 4
        %s169 = scalar_lea.vmem [#allocation3], %s168
        // Predicated region
        $region29: #{tpu_custom_call.1} parent=27 // pred_check
          %p170 = pneg %p55
        $region30: #{tpu_custom_call.1} parent=27 // pred_check_branch
          %172 = sbr.rel (%p170) target = $region32
        $region31: #{tpu_custom_call.1} parent=27 // pred_region
          %174 = dma.done %s166, 64
        $region32: #{tpu_custom_call.1} parent=27 // pred_fallthru
          _
        // Predicated region
        $region33: #{tpu_custom_call.1} parent=27 // pred_check
          %p175 = pneg %p76
        $region34: #{tpu_custom_call.1} parent=27 // pred_check_branch
          %177 = sbr.rel (%p175) target = $region36
        $region35: #{tpu_custom_call.1} parent=27 // pred_region
          %179 = dma.done [#allocation7], 256
        $region36: #{tpu_custom_call.1} parent=27 // pred_fallthru
          _
        %s180 = sand.u32 %s42, 1
        %s181 = scalar_lea.sflag [#allocation4], %s180
        %s182 = sand.u32 %s42, 1
        %s183 = smul.addr %s182, 4
        %s184 = scalar_lea.vmem [#allocation3], %s183
        %p185 = pneg %p55
        %p186 = pneg %p52
        %p187 = pneg %p76
        %p188 = pneg %p73
        %p189 = pneg %p104
        %p190 = pneg %p101
        %s191 = sand.u32 %s91, 1
        %s192 = scalar_lea.sflag [#allocation5], %s191
        %s193 = sand.u32 %s91, 1
        %s194 = smul.addr %s193, 4
        %s195 = scalar_lea.vmem [#allocation8], %s194
        %p197 = scmp.eq.s32.totalorder %s25, 0
        // Predicated region
        $region37: #{tpu_custom_call.1} parent=27 // pred_check
          %p198 = pneg %p197
        $region38: #{tpu_custom_call.1} parent=27 // pred_check_branch
          %200 = sbr.rel (%p198) target = $region40
        $region39: #{tpu_custom_call.1} parent=27 // pred_region
          %vm201 = vcmask 261120
          %202 = vst.msk [vmem:[#allocation2] sm:$0xff] %vm201, 0.0
          %203 = vst.msk [vmem:[#allocation2 + $0x8] sm:$0xff] %vm201, 0.0
          %204 = vst.msk [vmem:[#allocation2 + $0x10] sm:$0xff] %vm201, 0.0
          %205 = vst.msk [vmem:[#allocation2 + $0x18] sm:$0xff] %vm201, 0.0
        $region40: #{tpu_custom_call.1} parent=27 // pred_fallthru
          _
        %v206 = vld [vmem:[%s169] sm:$0xf]
        %v207 = vld [vmem:[#allocation6] sm:$0xf]
        %v208 = vld [vmem:[#allocation6 + $0x4] sm:$0xf]
        %v209 = vld [vmem:[#allocation6 + $0x8] sm:$0xf]
        %v210 = vld [vmem:[#allocation6 + $0xc] sm:$0xf]
        %v215 = vunpack.c.l.b16 %v207
        %v216 = vunpack.c.l.b16 %v208
        %v217 = vunpack.c.l.b16 %v209
        %v218 = vunpack.c.l.b16 %v210
        %v219 = vpack.c.b16 %v216, %v215
        %v220 = vpack.c.b16 %v218, %v217
        %vm223 = vcmask 261120
        %v225 = vsel %vm223, %v206, 0
        %227 = vmatpush.bf16.msra.mxu0 0
        %228 = vmatpush.bf16.msra.mxu0 0
        %229 = vmatpush.bf16.msra.mxu0 0
        %230 = vmatpush.bf16.msra.mxu0 0
        %231 = vmatpush.bf16.msra.mxu0 0
        %232 = vmatpush.bf16.msra.mxu0 0
        %233 = vmatpush.bf16.msra.mxu0 %v220
        %234 = vmatpush.bf16.msra.mxu0 %v219
        %235 = vmatmul.bf16.gmra.mxu0 %v225
        %v236 = vpop.f32.mrf.mxu0
        %v237 = vadd.f32 0.0, %v236
        %v238 = vpop.f32.mrf.mxu0
        %239 = vdwg.mxu0
        %v240 = vmax.f32 %v237, 0.0
        %v241 = vld [vmem:[#allocation2] sm:$0xff]
        %v242 = vld [vmem:[#allocation2 + $0x8] sm:$0xff]
        %v243 = vld [vmem:[#allocation2 + $0x10] sm:$0xff]
        %v244 = vld [vmem:[#allocation2 + $0x18] sm:$0xff]
        %v246 = vsel %vm223, %v240, 0
        %248 = vmatpush.msra.mxu0 0.0
        %249 = vmatpush.msra.mxu0 0.0
        %250 = vmatpush.msra.mxu0 0.0
        %251 = vmatpush.msra.mxu0 0.0
        %252 = vmatpush.msra.mxu0 0.0
        %253 = vmatpush.msra.mxu0 0.0
        %254 = vmatpush.msra.mxu0 0.0
        %255 = vmatpush.msra.mxu0 0.0
        %256 = vmatpush.msra.mxu0 0.0
        %257 = vmatpush.msra.mxu0 0.0
        %258 = vmatpush.msra.mxu0 0.0
        %259 = vmatpush.msra.mxu0 0.0
        %260 = vmatpush.msra.mxu0 %v244
        %261 = vmatpush.msra.mxu0 %v243
        %262 = vmatpush.msra.mxu0 %v242
        %263 = vmatpush.msra.mxu0 %v241
        %264 = vmatmul.f32.gmra.mxu0 %v246
        %v265 = vpop.f32.mrf.mxu0
        %v266 = vadd.f32 0.0, %v265
        %267 = vdwg.mxu0
        %v268 = vunpack.c.l.bf16 %v206
        %v269 = vadd.f32 %v268, %v266
        %v270 = vpack.c.bf16 %v269, %v269
        %vm271 = vcmask 257024
        %272 = vst.msk [vmem:[%s195] sm:$0xf] %vm271, %v270
        %v273 = vpack.c.bf16 %v240, %v240
        %v274 = vpack.c.bf16 %v237, %v237
        %276 = vrot.lane.b32.xlu0 %v273, 96
        %v277 = vpop.permute.xlu0 %276
        %279 = vxpose.xlu0.c.b16.start [1/8] %v277, 128
        %280 = vxpose.xlu0.c.b16.cont [2/8] 0, 128
        %281 = vxpose.xlu0.c.b16.cont [3/8] 0, 128
        %282 = vxpose.xlu0.c.b16.cont [4/8] 0, 128
        %283 = vxpose.xlu0.c.b16.cont [5/8] 0, 128
        %284 = vxpose.xlu0.c.b16.cont [6/8] 0, 128
        %285 = vxpose.xlu0.c.b16.cont [7/8] 0, 128
        %286 = vxpose.xlu0.c.b16.end [8/8] 0, 128
        %v287 = vpop.trf.xlu0
        %v288 = vpop.trf.xlu0
        %v289 = vpop.trf.xlu0
        %v290 = vpop.trf.xlu0
        %v291 = vpop.trf.xlu0
        %v292 = vpop.trf.xlu0
        %v293 = vpop.trf.xlu0
        %v294 = vpop.trf.xlu0
        %296 = vrot.lane.b32.xlu0 %v274, 64
        %v297 = vpop.permute.xlu0 %296
        %vm298 = vcmask 64512
        %v300 = vsel %vm298, %v287, 0
        %v303 = vsel %vm298, %v288, 0
        %vm305 = vcmask 1043456
        %v307 = vsel %vm305, %v297, 0
        %309 = vmatpush.bf16.msra.mxu0 0
        %310 = vmatpush.bf16.msra.mxu0 0
        %311 = vmatpush.bf16.msra.mxu0 0
        %312 = vmatpush.bf16.msra.mxu0 0
        %313 = vmatpush.bf16.msra.mxu0 0
        %314 = vmatpush.bf16.msra.mxu0 0
        %315 = vmatpush.bf16.msra.mxu0 0
        %316 = vmatpush.bf16.msra.mxu0 %v307
        %317 = vmatmul.bf16.gmra.mxu0 %v300
        %v318 = vpop.f32.mrf.mxu0
        %v319 = vadd.f32 0.0, %v318
        %v320 = vpop.f32.mrf.mxu0
        %v321 = vadd.f32 0.0, %v320
        %322 = vmatmul.bf16.gmra.mxu0 %v303
        %v323 = vpop.f32.mrf.mxu0
        %v324 = vadd.f32 0.0, %v323
        %v325 = vpop.f32.mrf.mxu0
        %v326 = vadd.f32 0.0, %v325
        %327 = vdwg.mxu0
        %v328 = vadd.f32 %v241, %v319
        %v329 = vadd.f32 %v242, %v321
        %v330 = vadd.f32 %v243, %v324
        %v331 = vadd.f32 %v244, %v326
        %332 = vst.msk [vmem:[#allocation2] sm:$0xff] %vm223, %v328
        %333 = vst.msk [vmem:[#allocation2 + $0x8] sm:$0xff] %vm223, %v329
        %334 = vst.msk [vmem:[#allocation2 + $0x10] sm:$0xff] %vm223, %v330
        %335 = vst.msk [vmem:[#allocation2 + $0x18] sm:$0xff] %vm223, %v331
        %s336 = sand.u32 %s91, 1
        %s337 = scalar_lea.sflag [#allocation5], %s336
        %s338 = sand.u32 %s91, 1
        %s339 = smul.addr %s338, 4
        %s340 = scalar_lea.vmem [#allocation8], %s339
        // Predicated region
        $region41: #{tpu_custom_call.1} parent=27 // pred_check
          %p341 = pneg %p101
        $region42: #{tpu_custom_call.1} parent=27 // pred_check_branch
          %343 = sbr.rel (%p341) target = $region44
        $region43: #{tpu_custom_call.1} parent=27 // pred_region
          %345 = vsyncadd %s337, 0
          %s346 = smul.addr %s24, 3
          %s347 = sadd.s32 %s25, %s346
          %s348 = smul.addr %s347, 4
          %s349 = scalar_lea.hbm %s2, %s348
          %s351 = sshll.u32 %s340, 4
          %s352 = int_to_ptr.vmem [resolvable:$true] %s351
          %s353 = sshll.u32 %s349, 4
          %s354 = int_to_ptr.hbm [resolvable:$true] %s353
          %356 = dma.vmem_to_hbm [thread:$0]  %s352, 64, %s354, %s337
        $region44: #{tpu_custom_call.1} parent=27 // pred_fallthru
          _
      $region28: #{tpu_custom_call.1} parent=5 // pred_fallthru
        _
      %p357 = scmp.le.s32.totalorder 2, %s15
      // Predicated region
      $region45: #{tpu_custom_call.1} parent=5 // pred_check
        %p358 = pneg %p357
      $region46: #{tpu_custom_call.1} parent=5 // pred_check_branch
        %360 = sbr.rel (%p358) target = $region48
      $region47: #{tpu_custom_call.1} parent=5 // pred_region
        %s361 = ssub.s32 %s15, 2
        // Predicated region
        $region49: #{tpu_custom_call.1} parent=47 // pred_check
          %p362 = pneg %p107
        $region50: #{tpu_custom_call.1} parent=47 // pred_check_branch
          %364 = sbr.rel (%p362) target = $region52
        $region51: #{tpu_custom_call.1} parent=47 // pred_region
          %s365 = sand.u32 %s92, 1
          %s366 = scalar_lea.sflag [#allocation5], %s365
          %s367 = sand.u32 %s92, 1
          %s368 = smul.addr %s367, 4
          %s369 = scalar_lea.vmem [#allocation8], %s368
          %371 = dma.done %s366, 64
        $region52: #{tpu_custom_call.1} parent=47 // pred_fallthru
          _
      $region48: #{tpu_custom_call.1} parent=5 // pred_fallthru
        _
    $region6: #{tpu_custom_call.1} parent=1 // loop_footer
      %s19 = sadd.s32 1, %s15
    $region7: #{tpu_custom_call.1} parent=1 // loop_footer_branch
      %14 = sbr.rel target = $region3
    $region8: #{tpu_custom_call.1} parent=1 // loop_exit
      _
    %372 = vsyncpa [#allocation4], 1
    %s373 = scalar_lea.sflag [#allocation4], 1
    %374 = vsyncpa %s373, 1
    %375 = vsyncpa [#allocation7], 1
    %376 = vsyncpa [#allocation5], 1
    %s377 = scalar_lea.sflag [#allocation5], 1
    %378 = vsyncpa %s377, 1

</llo_original>
